<compile_context>
chip_gen: v7x
topology: tpu7x:2x2x1
jax: 0.10.0
libtpu: 0.0.40
codegen_flags: <defaults>
</compile_context>

<pallas_src>
import math

import jax
import jax.numpy as jnp
from jax.experimental import pallas as pl
from jax.experimental.pallas import tpu as pltpu


def _round_up(x, m):
    return ((x + m - 1) // m) * m


def _critic_kernel(x_ref, w1_ref, b1_ref, w2_ref, b2_ref, wq_ref, bq_ref, out_ref):
    mm_dtype = w1_ref.dtype  # bf16 MXU operands

    # fc1 over the (pre-concatenated, transposed) input: (fc1p, d_in) @ (d_in, B).
    h1 = jnp.dot(w1_ref[...], x_ref[...], preferred_element_type=jnp.float32)
    h1 = jnp.maximum(h1 + b1_ref[...], 0.0)            # bias/ReLU in f32

    # fc2: (fc2p, fc1p) @ (fc1p, B), f32 accumulate.
    h2 = jnp.dot(w2_ref[...], h1.astype(mm_dtype), preferred_element_type=jnp.float32)
    h2 = jnp.maximum(h2 + b2_ref[...], 0.0)

    # q1 head (output width 1): VPU multiply + sublane reduction -> lane-dense
    # (1, tile_b) row, kept off the MXU (avoids a near-empty M=1 matmul pass).
    q = jnp.sum(h2 * wq_ref[...], axis=0, keepdims=True) + bq_ref[...]
    out_ref[...] = q.astype(out_ref.dtype)


def prepare_critic_params(params, *, lane=128, matmul_dtype=jnp.bfloat16):
    """Transpose to feature-major layout, zero-pad hidden dims to 128 lanes,
    cast MXU weights to bf16. Padded units are mathematically dead (zero weight,
    zero bias, zero wq), so the math is identical to the unpadded network."""
    w1, b1 = params["w1"], params["b1"]   # (d_in, fc1), (1, fc1)
    w2, b2 = params["w2"], params["b2"]   # (fc1, fc2), (1, fc2)
    wq, bq = params["wq"], params["bq"]   # (fc2, 1),   (1, 1)

    d_in, fc1 = w1.shape
    fc2 = w2.shape[1]
    fc1p = _round_up(fc1, lane)
    fc2p = _round_up(fc2, lane)

    w1_t = jnp.zeros((fc1p, d_in), jnp.float32).at[:fc1, :].set(w1.T)
    b1_c = jnp.zeros((fc1p, 1), jnp.float32).at[:fc1, 0].set(b1[0])
    w2_t = jnp.zeros((fc2p, fc1p), jnp.float32).at[:fc2, :fc1].set(w2.T)
    b2_c = jnp.zeros((fc2p, 1), jnp.float32).at[:fc2, 0].set(b2[0])
    wq_c = jnp.zeros((fc2p, 1), jnp.float32).at[:fc2, :].set(wq)

    return {
        "w1_t": w1_t.astype(matmul_dtype),
        "b1_c": b1_c,                      # f32: bias/ReLU stay in f32
        "w2_t": w2_t.astype(matmul_dtype),
        "b2_c": b2_c,
        "wq_c": wq_c,                      # f32: used on the VPU, not the MXU
        "bq": bq.astype(jnp.float32),
    }


def _default_tile_b(batch, fc1p, fc2p, *, vmem_budget_bytes=12 * 1024 * 1024):
    """Largest 128-multiple batch tile whose per-column intermediates fit budget.

    Per batch column the live f32/bf16 intermediates are ~ h1(f32) + h1(bf16) +
    h2(f32) + q-head product(f32) = 6*fc1p + 8*fc2p bytes; resident weights are
    small by comparison. At fc1p=512/fc2p=384 this yields tile_b=2048 (~12 MiB),
    comfortably inside even v7x's 64 MiB VMEM.
    """
    bytes_per_col = 6 * fc1p + 8 * fc2p
    cap = (vmem_budget_bytes // bytes_per_col) // 128 * 128
    cap = max(128, min(2048, cap))
    return min(cap, _round_up(batch, 128))


def critic_forward(state, action, prepared, *, tile_b=None):
    """Pallas equivalent of CriticNetwork.forward(state, action) -> (batch, 1)."""
    batch = state.shape[0]

    w1_t, b1_c = prepared["w1_t"], prepared["b1_c"]
    w2_t, b2_c = prepared["w2_t"], prepared["b2_c"]
    wq_c, bq = prepared["wq_c"], prepared["bq"]
    fc1p, d_in = w1_t.shape
    fc2p = w2_t.shape[0]

    # Concat + transpose + bf16 cast in one tiny wrapper pass (12 values/row):
    # presents a lane-dense (d_in, batch) slab so batch stays on lanes end-to-end.
    x_t = jnp.concatenate([state.astype(jnp.float32),
                           action.astype(jnp.float32)], axis=1).T.astype(w1_t.dtype)

    if tile_b is None:
        tile_b = _default_tile_b(batch, fc1p, fc2p)
    tile_b = max(128, _round_up(tile_b, 128))          # lane-aligned block
    grid = (pl.cdiv(batch, tile_b),)                   # ragged last block, no pad

    def resident(arr):
        # Weights/biases never change block index -> DMA'd once, VMEM-resident.
        # (pipeline_mode=pl.Buffered(1) would halve their footprint; irrelevant
        #  at ~0.5 MiB total, so left at the default.)
        return pl.BlockSpec(arr.shape, lambda i: (0, 0))

    out = pl.pallas_call(
        _critic_kernel,
        out_shape=jax.ShapeDtypeStruct((1, batch), jnp.float32),
        grid=grid,
        in_specs=[
            pl.BlockSpec((d_in, tile_b), lambda i: (0, i)),
            resident(w1_t),
            resident(b1_c),
            resident(w2_t),
            resident(b2_c),
            resident(wq_c),
            resident(bq),
        ],
        # Lane-dense output row: full 128-lane stores + a dense write-back DMA,
        # instead of the old (tile_b, 1) masked column stores.
        out_specs=pl.BlockSpec((1, tile_b), lambda i: (0, i)),
        # TODO(synk): on v7x switch the batch axis to pltpu.CORE_PARALLEL (or a
        # pl.core_map tensorcore mesh) to shard tiles across its 2 TensorCores;
        # kept as "parallel" here for portability to single-TC v5e/v6e.
        compiler_params=pltpu.CompilerParams(
            dimension_semantics=("parallel",),
            vmem_limit_bytes=32 * 1024 * 1024,
        ),
    )(x_t, w1_t, b1_c, w2_t, b2_c, wq_c, bq)

    # TODO(synk): for TD3 twin heads / a CEM population, stack critics into one
    # pallas_call (extra leading grid axis over heads) to amortize fixed overhead.
    return out.reshape(batch, 1)


def init_critic_params(key, input_dims, n_actions, fc1_dims, fc2_dims):
    """Deterministic init matching PyTorch nn.Linear default (U[-1/sqrt(fan_in), +])."""
    d_in = input_dims[0] + n_actions

    def linear(k, fan_in, fan_out):
        kw, kb = jax.random.split(k)
        bound = 1.0 / math.sqrt(fan_in)
        w = jax.random.uniform(kw, (fan_in, fan_out), jnp.float32, -bound, bound)
        b = jax.random.uniform(kb, (1, fan_out), jnp.float32, -bound, bound)
        return w, b

    k1, k2, k3 = jax.random.split(key, 3)
    w1, b1 = linear(k1, d_in, fc1_dims)
    w2, b2 = linear(k2, fc1_dims, fc2_dims)
    wq, bq = linear(k3, fc2_dims, 1)
    return {"w1": w1, "b1": b1, "w2": w2, "b2": b2, "wq": wq, "bq": bq}


def _reference_forward(state, action, p):
    x = jnp.concatenate([state, action], axis=1)
    h1 = jnp.maximum(x @ p["w1"] + p["b1"], 0.0)
    h2 = jnp.maximum(h1 @ p["w2"] + p["b2"], 0.0)
    return h2 @ p["wq"] + p["bq"]


if __name__ == "__main__":
    key = jax.random.PRNGKey(0)
    kp, ks, ka, kp2, ks2, ka2 = jax.random.split(key, 6)

    forward = jax.jit(critic_forward, static_argnames=("tile_b",))

    # Case 1: tiny shapes consistent with the module's forward
    # (single grid step; block larger than batch -> partial block path).
    batch, input_dims, n_actions = 2, (8,), 4
    fc1_dims, fc2_dims = 32, 32
    params = init_critic_params(kp, input_dims, n_actions, fc1_dims, fc2_dims)
    prepared = prepare_critic_params(params)
    state = jax.random.normal(ks, (batch, input_dims[0]), jnp.float32)
    action = jax.random.normal(ka, (batch, n_actions), jnp.float32)

    q = jax.block_until_ready(forward(state, action, prepared))
    q_ref = _reference_forward(state, action, params)
    assert q.shape == (batch, 1), q.shape
    # bf16 MXU operands with f32 accumulation: loosened tolerance (intentional).
    assert jnp.allclose(q, q_ref, atol=5e-2, rtol=5e-2), (q, q_ref)

    # Case 2: multi-tile grid with a ragged last block and non-128 hidden dims.
    batch2, fc1b, fc2b = 200, 48, 40
    params2 = init_critic_params(kp2, input_dims, n_actions, fc1b, fc2b)
    prepared2 = prepare_critic_params(params2)
    state2 = jax.random.normal(ks2, (batch2, input_dims[0]), jnp.float32)
    action2 = jax.random.normal(ka2, (batch2, n_actions), jnp.float32)

    q2 = jax.block_until_ready(forward(state2, action2, prepared2, tile_b=128))
    q2_ref = _reference_forward(state2, action2, params2)
    assert q2.shape == (batch2, 1), q2.shape
    assert jnp.allclose(q2, q2_ref, atol=5e-2, rtol=5e-2), (q2, q2_ref)

    print("KERNEL_OK")
</pallas_src>

<mosaic_0001>
module attributes {stable_mosaic.version = 11 : i64} {
  func.func @_critic_kernel(%arg0: i32, %arg1: memref<12x128xbf16, #tpu.memory_space<vmem>>, %arg2: memref<128x12xbf16, #tpu.memory_space<vmem>>, %arg3: memref<128x1xf32, #tpu.memory_space<vmem>>, %arg4: memref<128x128xbf16, #tpu.memory_space<vmem>>, %arg5: memref<128x1xf32, #tpu.memory_space<vmem>>, %arg6: memref<128x1xf32, #tpu.memory_space<vmem>>, %arg7: memref<1x1xf32, #tpu.memory_space<vmem>>, %arg8: memref<1x128xf32, #tpu.memory_space<vmem>>) attributes {dimension_semantics = [#tpu.dimension_semantics<parallel>], iteration_bounds = array<i64: 1>, scalar_prefetch = 0 : i64, scratch_operands = 0 : i64, tpu.core_type = #tpu.core_type<tc>, window_params = [{transform_indices = @transform_0, window_bounds = array<i64: 12, 128>}, {pipeline_mode = #tpu.pipeline_mode<synchronous>, transform_indices = @transform_1, window_bounds = array<i64: 128, 12>}, {pipeline_mode = #tpu.pipeline_mode<synchronous>, transform_indices = @transform_2, window_bounds = array<i64: 128, 1>}, {pipeline_mode = #tpu.pipeline_mode<synchronous>, transform_indices = @transform_3, window_bounds = array<i64: 128, 128>}, {pipeline_mode = #tpu.pipeline_mode<synchronous>, transform_indices = @transform_4, window_bounds = array<i64: 128, 1>}, {pipeline_mode = #tpu.pipeline_mode<synchronous>, transform_indices = @transform_5, window_bounds = array<i64: 128, 1>}, {pipeline_mode = #tpu.pipeline_mode<synchronous>, transform_indices = @transform_6, window_bounds = array<i64: 1, 1>}, {transform_indices = @transform_7, window_bounds = array<i64: 1, 128>}]} {
    %c0 = arith.constant 0 : index
    %c0_0 = arith.constant 0 : index
    %0 = vector.load %arg2[%c0, %c0_0] : memref<128x12xbf16, #tpu.memory_space<vmem>>, vector<128x12xbf16>
    %c0_1 = arith.constant 0 : index
    %c0_2 = arith.constant 0 : index
    %1 = vector.load %arg1[%c0_1, %c0_2] : memref<12x128xbf16, #tpu.memory_space<vmem>>, vector<12x128xbf16>
    %cst = arith.constant dense<0.000000e+00> : vector<128x128xf32>
    %2 = tpu.matmul %0, %1, %cst {dimension_numbers = #tpu.dot_dimension_numbers<[1], [0], [0], [1], [0, 0, 1, 1], [], []>} : vector<128x12xbf16>, vector<12x128xbf16>, vector<128x128xf32> -> vector<128x128xf32>
    %c0_3 = arith.constant 0 : index
    %c0_4 = arith.constant 0 : index
    %3 = vector.load %arg3[%c0_3, %c0_4] : memref<128x1xf32, #tpu.memory_space<vmem>>, vector<128x1xf32>
    %4 = vector.broadcast %3 : vector<128x1xf32> to vector<128x128xf32>
    %5 = arith.addf %2, %4 : vector<128x128xf32>
    %cst_5 = arith.constant 0.000000e+00 : f32
    %6 = vector.broadcast %cst_5 : f32 to vector<128x128xf32>
    %7 = arith.maximumf %5, %6 : vector<128x128xf32>
    %c0_6 = arith.constant 0 : index
    %c0_7 = arith.constant 0 : index
    %8 = vector.load %arg4[%c0_6, %c0_7] : memref<128x128xbf16, #tpu.memory_space<vmem>>, vector<128x128xbf16>
    %9 = arith.truncf %7 : vector<128x128xf32> to vector<128x128xbf16>
    %cst_8 = arith.constant dense<0.000000e+00> : vector<128x128xf32>
    %10 = tpu.matmul %8, %9, %cst_8 {dimension_numbers = #tpu.dot_dimension_numbers<[1], [0], [0], [1], [0, 0, 1, 1], [], []>} : vector<128x128xbf16>, vector<128x128xbf16>, vector<128x128xf32> -> vector<128x128xf32>
    %c0_9 = arith.constant 0 : index
    %c0_10 = arith.constant 0 : index
    %11 = vector.load %arg5[%c0_9, %c0_10] : memref<128x1xf32, #tpu.memory_space<vmem>>, vector<128x1xf32>
    %12 = vector.broadcast %11 : vector<128x1xf32> to vector<128x128xf32>
    %13 = arith.addf %10, %12 : vector<128x128xf32>
    %cst_11 = arith.constant 0.000000e+00 : f32
    %14 = vector.broadcast %cst_11 : f32 to vector<128x128xf32>
    %15 = arith.maximumf %13, %14 : vector<128x128xf32>
    %c0_12 = arith.constant 0 : index
    %c0_13 = arith.constant 0 : index
    %16 = vector.load %arg6[%c0_12, %c0_13] : memref<128x1xf32, #tpu.memory_space<vmem>>, vector<128x1xf32>
    %17 = vector.broadcast %16 : vector<128x1xf32> to vector<128x128xf32>
    %18 = arith.mulf %15, %17 : vector<128x128xf32>
    %cst_14 = arith.constant dense<0.000000e+00> : vector<128xf32>
    %19 = vector.multi_reduction <add>, %18, %cst_14 [0] : vector<128x128xf32> to vector<128xf32>
    %20 = vector.shape_cast %19 : vector<128xf32> to vector<1x128xf32>
    %c0_15 = arith.constant 0 : index
    %c0_16 = arith.constant 0 : index
    %21 = vector.load %arg7[%c0_15, %c0_16] : memref<1x1xf32, #tpu.memory_space<vmem>>, vector<1x1xf32>
    %22 = vector.broadcast %21 : vector<1x1xf32> to vector<1x128xf32>
    %23 = arith.addf %20, %22 : vector<1x128xf32>
    %c0_17 = arith.constant 0 : index
    %c0_18 = arith.constant 0 : index
    %24 = vector.load %arg8[%c0_17, %c0_18] : memref<1x128xf32, #tpu.memory_space<vmem>>, vector<1x128xf32>
    tpu.vector_store %arg8[%c0_17, %c0_18], %23 {strides = array<i32>} : memref<1x128xf32, #tpu.memory_space<vmem>>, vector<1x128xf32>,
    return
  }
  func.func @transform_0(%arg0: i32) -> (i32, i32) {
    %c0_i32 = arith.constant 0 : i32
    %c0_i32_0 = arith.constant 0 : i32
    return %c0_i32, %arg0 : i32, i32
  }
  func.func @transform_1(%arg0: i32) -> (i32, i32) {
    %c0_i32 = arith.constant 0 : i32
    %c0_i32_0 = arith.constant 0 : i32
    %c0_i32_1 = arith.constant 0 : i32
    return %c0_i32, %c0_i32_0 : i32, i32
  }
  func.func @transform_2(%arg0: i32) -> (i32, i32) {
    %c0_i32 = arith.constant 0 : i32
    %c0_i32_0 = arith.constant 0 : i32
    %c0_i32_1 = arith.constant 0 : i32
    return %c0_i32, %c0_i32_0 : i32, i32
  }
  func.func @transform_3(%arg0: i32) -> (i32, i32) {
    %c0_i32 = arith.constant 0 : i32
    %c0_i32_0 = arith.constant 0 : i32
    %c0_i32_1 = arith.constant 0 : i32
    return %c0_i32, %c0_i32_0 : i32, i32
  }
  func.func @transform_4(%arg0: i32) -> (i32, i32) {
    %c0_i32 = arith.constant 0 : i32
    %c0_i32_0 = arith.constant 0 : i32
    %c0_i32_1 = arith.constant 0 : i32
    return %c0_i32, %c0_i32_0 : i32, i32
  }
  func.func @transform_5(%arg0: i32) -> (i32, i32) {
    %c0_i32 = arith.constant 0 : i32
    %c0_i32_0 = arith.constant 0 : i32
    %c0_i32_1 = arith.constant 0 : i32
    return %c0_i32, %c0_i32_0 : i32, i32
  }
  func.func @transform_6(%arg0: i32) -> (i32, i32) {
    %c0_i32 = arith.constant 0 : i32
    %c0_i32_0 = arith.constant 0 : i32
    %c0_i32_1 = arith.constant 0 : i32
    return %c0_i32, %c0_i32_0 : i32, i32
  }
  func.func @transform_7(%arg0: i32) -> (i32, i32) {
    %c0_i32 = arith.constant 0 : i32
    %c0_i32_0 = arith.constant 0 : i32
    return %c0_i32, %arg0 : i32, i32
  }
}

</mosaic_0001>

<llo_original>
// kernel: critic_forward.1
$region0: #{critic_forward.1}
  #allocation0 [shape = 'u32[]', space=smem, size = 0x4, offset = 0x4, fixed_abs, tag = 'smem constant byte address 0x4 - core index']
  #allocation1 [shape = 'u32[144,128]{1,0:T(1,128)}', space=vmem, size = 0x12000, scoped, tag = 'internal scratch']
  #allocation2 [shape = 'f32[1,1]{1,0:T(1,128)S(1)}', space=vmem, size = 0x200, scoped, tag = 'scoped memory for critic_forward.1']
  %s0 = inlined_call_operand.vmem [shape: bf16[12,2], index: 0, kind: input, shape index: {}]
  %s1 = inlined_call_operand.vmem [shape: bf16[128,12], index: 1, kind: input, shape index: {}]
  %s2 = inlined_call_operand.vmem [shape: f32[128,1], index: 2, kind: input, shape index: {}]
  %s3 = inlined_call_operand.vmem [shape: bf16[128,128], index: 3, kind: input, shape index: {}]
  %s4 = inlined_call_operand.vmem [shape: f32[128,1], index: 4, kind: input, shape index: {}]
  %s5 = inlined_call_operand.vmem [shape: f32[128,1], index: 5, kind: input, shape index: {}]
  %s6 = inlined_call_operand.<no memory space> [shape: f32[1,1], index: 6, kind: input, shape index: {}]
  %s7 = inlined_call_operand.hbm [shape: f32[1,2], index: 7, kind: output, shape index: {}]
  %s8 = sld [smem:[#allocation0]]
  $region38: #{critic_forward.1} parent=0
    _
  %s10 = ssub.s32 1, %s8
  %s11 = scalar_select 0, %s10, %s8
  %v12 = vstv %s6
  %13 = vst [vmem:[#allocation2] sm:$0x1] %v12
  $region1: #{critic_forward.1} parent=0
    #allocation3 [shape = 'u8[512]{0}', space=vmem, size = 0x400, scoped, tag = 'output window, operand 0, single buffered']
    #allocation4 [shape = 's32[1]{0}', space=sflag, size = 0x4, scoped, tag = 'scoped memory for critic_forward.1']
    %14 = vsyncpa [#allocation4], 0
    // Predicated region
    $region2: #{critic_forward.1} parent=1 // pred_check
      _
    $region3: #{critic_forward.1} parent=1 // pred_check_branch
      %16 = sbr.rel (0) target = $region5
    $region4: #{critic_forward.1} parent=1 // pred_region
      _
    $region5: #{critic_forward.1} parent=1 // pred_fallthru
      _
    // Predicated region
    $region6: #{critic_forward.1} parent=1 // pred_check
      _
    $region7: #{critic_forward.1} parent=1 // pred_check_branch
      %18 = sbr.rel (0) target = $region9
    $region8: #{critic_forward.1} parent=1 // pred_region
      _
    $region9: #{critic_forward.1} parent=1 // pred_fallthru
      _
    // Predicated region
    $region10: #{critic_forward.1} parent=1 // pred_check
      _
    $region11: #{critic_forward.1} parent=1 // pred_check_branch
      %20 = sbr.rel (0) target = $region13
    $region12: #{critic_forward.1} parent=1 // pred_region
      _
    $region13: #{critic_forward.1} parent=1 // pred_fallthru
      _
    // Predicated region
    $region14: #{critic_forward.1} parent=1 // pred_check
      _
    $region15: #{critic_forward.1} parent=1 // pred_check_branch
      %22 = sbr.rel (0) target = $region17
    $region16: #{critic_forward.1} parent=1 // pred_region
      _
    $region17: #{critic_forward.1} parent=1 // pred_fallthru
      _
    // Predicated region
    $region18: #{critic_forward.1} parent=1 // pred_check
      _
    $region19: #{critic_forward.1} parent=1 // pred_check_branch
      %24 = sbr.rel (0) target = $region21
    $region20: #{critic_forward.1} parent=1 // pred_region
      _
    $region21: #{critic_forward.1} parent=1 // pred_fallthru
      _
    // Predicated region
    $region22: #{critic_forward.1} parent=1 // pred_check
      _
    $region23: #{critic_forward.1} parent=1 // pred_check_branch
      %26 = sbr.rel (0) target = $region25
    $region24: #{critic_forward.1} parent=1 // pred_region
      _
    $region25: #{critic_forward.1} parent=1 // pred_fallthru
      _
    // Predicated region
    $region26: #{critic_forward.1} parent=1 // pred_check
      _
    $region27: #{critic_forward.1} parent=1 // pred_check_branch
      %28 = sbr.rel (0) target = $region29
    $region28: #{critic_forward.1} parent=1 // pred_region
      _
    $region29: #{critic_forward.1} parent=1 // pred_fallthru
      _
    %v30 = vld [vmem:[%s1] sm:$0xf]
    %v31 = vld [vmem:[%s1 + $0x4] sm:$0xf]
    %v32 = vld [vmem:[%s1 + $0x8] sm:$0xf]
    %v33 = vld [vmem:[%s1 + $0xc] sm:$0xf]
    %v34 = vld [vmem:[%s1 + $0x10] sm:$0xf]
    %v35 = vld [vmem:[%s1 + $0x14] sm:$0xf]
    %v36 = vld [vmem:[%s1 + $0x18] sm:$0xf]
    %v37 = vld [vmem:[%s1 + $0x1c] sm:$0xf]
    %v38 = vld [vmem:[%s1 + $0x20] sm:$0xf]
    %v39 = vld [vmem:[%s1 + $0x24] sm:$0xf]
    %v40 = vld [vmem:[%s1 + $0x28] sm:$0xf]
    %v41 = vld [vmem:[%s1 + $0x2c] sm:$0xf]
    %v42 = vld [vmem:[%s1 + $0x30] sm:$0xf]
    %v43 = vld [vmem:[%s1 + $0x34] sm:$0xf]
    %v44 = vld [vmem:[%s1 + $0x38] sm:$0xf]
    %v45 = vld [vmem:[%s1 + $0x3c] sm:$0xf]
    %v46 = vld [vmem:[%s0] sm:$0xf]
    %v47 = vld [vmem:[%s0 + $0x4] sm:$0x3]
    %v48 = vld [vmem:[%s2] sm:$0xff]
    %v49 = vld [vmem:[%s2 + $0x8] sm:$0xff]
    %v50 = vld [vmem:[%s2 + $0x10] sm:$0xff]
    %v51 = vld [vmem:[%s2 + $0x18] sm:$0xff]
    %v52 = vld [vmem:[%s2 + $0x20] sm:$0xff]
    %v53 = vld [vmem:[%s2 + $0x28] sm:$0xff]
    %v54 = vld [vmem:[%s2 + $0x30] sm:$0xff]
    %v55 = vld [vmem:[%s2 + $0x38] sm:$0xff]
    %v56 = vld [vmem:[%s2 + $0x40] sm:$0xff]
    %v57 = vld [vmem:[%s2 + $0x48] sm:$0xff]
    %v58 = vld [vmem:[%s2 + $0x50] sm:$0xff]
    %v59 = vld [vmem:[%s2 + $0x58] sm:$0xff]
    %v60 = vld [vmem:[%s2 + $0x60] sm:$0xff]
    %v61 = vld [vmem:[%s2 + $0x68] sm:$0xff]
    %v62 = vld [vmem:[%s2 + $0x70] sm:$0xff]
    %v63 = vld [vmem:[%s2 + $0x78] sm:$0xff]
    %65 = vset.pattern.permute.xlu0 0
    %66 = vperm.xlu0 %65, %v48
    %v67 = vpop.permute.xlu0 %66
    %70 = vset.pattern.permute.xlu0 0
    %71 = vperm.xlu0 %70, %v49
    %v72 = vpop.permute.xlu0 %71
    %75 = vset.pattern.permute.xlu0 0
    %76 = vperm.xlu0 %75, %v50
    %v77 = vpop.permute.xlu0 %76
    %80 = vset.pattern.permute.xlu0 0
    %81 = vperm.xlu0 %80, %v51
    %v82 = vpop.permute.xlu0 %81
    %85 = vset.pattern.permute.xlu0 0
    %86 = vperm.xlu0 %85, %v52
    %v87 = vpop.permute.xlu0 %86
    %90 = vset.pattern.permute.xlu0 0
    %91 = vperm.xlu0 %90, %v53
    %v92 = vpop.permute.xlu0 %91
    %95 = vset.pattern.permute.xlu0 0
    %96 = vperm.xlu0 %95, %v54
    %v97 = vpop.permute.xlu0 %96
    %100 = vset.pattern.permute.xlu0 0
    %101 = vperm.xlu0 %100, %v55
    %v102 = vpop.permute.xlu0 %101
    %105 = vset.pattern.permute.xlu0 0
    %106 = vperm.xlu0 %105, %v56
    %v107 = vpop.permute.xlu0 %106
    %110 = vset.pattern.permute.xlu0 0
    %111 = vperm.xlu0 %110, %v57
    %v112 = vpop.permute.xlu0 %111
    %115 = vset.pattern.permute.xlu0 0
    %116 = vperm.xlu0 %115, %v58
    %v117 = vpop.permute.xlu0 %116
    %120 = vset.pattern.permute.xlu0 0
    %121 = vperm.xlu0 %120, %v59
    %v122 = vpop.permute.xlu0 %121
    %125 = vset.pattern.permute.xlu0 0
    %126 = vperm.xlu0 %125, %v60
    %v127 = vpop.permute.xlu0 %126
    %130 = vset.pattern.permute.xlu0 0
    %131 = vperm.xlu0 %130, %v61
    %v132 = vpop.permute.xlu0 %131
    %135 = vset.pattern.permute.xlu0 0
    %136 = vperm.xlu0 %135, %v62
    %v137 = vpop.permute.xlu0 %136
    %140 = vset.pattern.permute.xlu0 0
    %141 = vperm.xlu0 %140, %v63
    %v142 = vpop.permute.xlu0 %141
    %v160 = vunpack.c.l.b16 %v30
    %v161 = vunpack.c.l.b16 %v31
    %v162 = vunpack.c.l.b16 %v32
    %v163 = vunpack.c.l.b16 %v33
    %v164 = vunpack.c.l.b16 %v34
    %v165 = vunpack.c.l.b16 %v35
    %v166 = vunpack.c.l.b16 %v36
    %v167 = vunpack.c.l.b16 %v37
    %v168 = vunpack.c.l.b16 %v38
    %v169 = vunpack.c.l.b16 %v39
    %v170 = vunpack.c.l.b16 %v40
    %v171 = vunpack.c.l.b16 %v41
    %v172 = vunpack.c.l.b16 %v42
    %v173 = vunpack.c.l.b16 %v43
    %v174 = vunpack.c.l.b16 %v44
    %v175 = vunpack.c.l.b16 %v45
    %v176 = vpack.c.b16 %v161, %v160
    %v177 = vpack.c.b16 %v163, %v162
    %v178 = vpack.c.b16 %v165, %v164
    %v179 = vpack.c.b16 %v167, %v166
    %v180 = vpack.c.b16 %v169, %v168
    %v181 = vpack.c.b16 %v171, %v170
    %v182 = vpack.c.b16 %v173, %v172
    %v183 = vpack.c.b16 %v175, %v174
    %v186 = vunpack.c.l.b16 %v46
    %v187 = vunpack.c.l.b16 %v47
    %v188 = vpack.c.b16 %v187, %v186
    %vm189 = vcmask 97280
    %v191 = vsel %vm189, %v176, 0
    %v194 = vsel %vm189, %v177, 0
    %v197 = vsel %vm189, %v178, 0
    %v200 = vsel %vm189, %v179, 0
    %v203 = vsel %vm189, %v180, 0
    %v206 = vsel %vm189, %v181, 0
    %v209 = vsel %vm189, %v182, 0
    %v212 = vsel %vm189, %v183, 0
    %vm214 = vcmask 1045504
    %v216 = vsel %vm214, %v188, 0
    %218 = vmatprep.subr.bf16.mxu0 0
    %219 = vmatpush1.bf16.msra.mxu0 %v216
    %220 = vmatprep.subr.bf16.mxu0 0
    %221 = vmatpush1.bf16.msra.mxu0 0
    %222 = vmatprep.subr.bf16.mxu0 0
    %223 = vmatpush1.bf16.msra.mxu0 0
    %224 = vmatprep.subr.bf16.mxu0 0
    %225 = vmatpush1.bf16.msra.mxu0 0
    %226 = vmatprep.subr.bf16.mxu0 0
    %227 = vmatpush1.bf16.msra.mxu0 0
    %228 = vmatprep.subr.bf16.mxu0 0
    %229 = vmatpush1.bf16.msra.mxu0 0
    %230 = vmatprep.subr.bf16.mxu0 0
    %231 = vmatpush1.bf16.msra.mxu0 0
    %232 = vmatprep.subr.bf16.mxu0 0
    %233 = vmatpush1.bf16.msra.mxu0 0
    %234 = vmatprep.subr.bf16.mxu0 0
    %235 = vmatpush1.bf16.msra.mxu0 0
    %236 = vmatprep.subr.bf16.mxu0 0
    %237 = vmatpush1.bf16.msra.mxu0 0
    %238 = vmatprep.subr.bf16.mxu0 0
    %239 = vmatpush1.bf16.msra.mxu0 0
    %240 = vmatprep.subr.bf16.mxu0 0
    %241 = vmatpush1.bf16.msra.mxu0 0
    %242 = vmatprep.subr.bf16.mxu0 0
    %243 = vmatpush1.bf16.msra.mxu0 0
    %244 = vmatprep.subr.bf16.mxu0 0
    %245 = vmatpush1.bf16.msra.mxu0 0
    %246 = vmatprep.subr.bf16.mxu0 0
    %247 = vmatpush1.bf16.msra.mxu0 0
    %248 = vmatprep.subr.bf16.mxu0 0
    %249 = vmatpush1.bf16.msra.mxu0 0
    %250 = vmatprep.mubr.bf16.mxu0 0
    %251 = vmatmul.mubr.bf16.gmra.mrb[0].mxu0 %v191
    %v252 = vpop.f32.mrb[0].mxu0
    %v253 = vadd.f32 %v67, %v252
    %v254 = vpop.f32.mrb[0].mxu0
    %v255 = vpop.f32.mrb[0].mxu0
    %v256 = vadd.f32 %v72, %v255
    %v257 = vpop.f32.mrb[0].mxu0
    %258 = vmatprep.mubr.bf16.mxu0 0
    %259 = vmatmul.mubr.bf16.gmra.mrb[0].mxu0 %v194
    %v260 = vpop.f32.mrb[0].mxu0
    %v261 = vadd.f32 %v77, %v260
    %v262 = vpop.f32.mrb[0].mxu0
    %v263 = vpop.f32.mrb[0].mxu0
    %v264 = vadd.f32 %v82, %v263
    %v265 = vpop.f32.mrb[0].mxu0
    %266 = vmatprep.mubr.bf16.mxu0 0
    %267 = vmatmul.mubr.bf16.gmra.mrb[0].mxu0 %v197
    %v268 = vpop.f32.mrb[0].mxu0
    %v269 = vadd.f32 %v87, %v268
    %v270 = vpop.f32.mrb[0].mxu0
    %v271 = vpop.f32.mrb[0].mxu0
    %v272 = vadd.f32 %v92, %v271
    %v273 = vpop.f32.mrb[0].mxu0
    %274 = vmatprep.mubr.bf16.mxu0 0
    %275 = vmatmul.mubr.bf16.gmra.mrb[0].mxu0 %v200
    %v276 = vpop.f32.mrb[0].mxu0
    %v277 = vadd.f32 %v97, %v276
    %v278 = vpop.f32.mrb[0].mxu0
    %v279 = vpop.f32.mrb[0].mxu0
    %v280 = vadd.f32 %v102, %v279
    %v281 = vpop.f32.mrb[0].mxu0
    %282 = vmatprep.mubr.bf16.mxu0 0
    %283 = vmatmul.mubr.bf16.gmra.mrb[0].mxu0 %v203
    %v284 = vpop.f32.mrb[0].mxu0
    %v285 = vadd.f32 %v107, %v284
    %v286 = vpop.f32.mrb[0].mxu0
    %v287 = vpop.f32.mrb[0].mxu0
    %v288 = vadd.f32 %v112, %v287
    %v289 = vpop.f32.mrb[0].mxu0
    %290 = vmatprep.mubr.bf16.mxu0 0
    %291 = vmatmul.mubr.bf16.gmra.mrb[0].mxu0 %v206
    %v292 = vpop.f32.mrb[0].mxu0
    %v293 = vadd.f32 %v117, %v292
    %v294 = vpop.f32.mrb[0].mxu0
    %v295 = vpop.f32.mrb[0].mxu0
    %v296 = vadd.f32 %v122, %v295
    %v297 = vpop.f32.mrb[0].mxu0
    %298 = vmatprep.mubr.bf16.mxu0 0
    %299 = vmatmul.mubr.bf16.gmra.mrb[0].mxu0 %v209
    %v300 = vpop.f32.mrb[0].mxu0
    %v301 = vadd.f32 %v127, %v300
    %v302 = vpop.f32.mrb[0].mxu0
    %v303 = vpop.f32.mrb[0].mxu0
    %v304 = vadd.f32 %v132, %v303
    %v305 = vpop.f32.mrb[0].mxu0
    %306 = vmatprep.mubr.bf16.mxu0 0
    %307 = vmatmul.mubr.bf16.gmra.mrb[0].mxu0 %v212
    %v308 = vpop.f32.mrb[0].mxu0
    %v309 = vadd.f32 %v137, %v308
    %v310 = vpop.f32.mrb[0].mxu0
    %v311 = vpop.f32.mrb[0].mxu0
    %v312 = vadd.f32 %v142, %v311
    %v313 = vpop.f32.mrb[0].mxu0
    %314 = vdwg.mxu0
    %v315 = vmax.f32 %v253, 0.0
    %v316 = vmax.f32 %v256, 0.0
    %v317 = vmax.f32 %v261, 0.0
    %v318 = vmax.f32 %v264, 0.0
    %v319 = vmax.f32 %v269, 0.0
    %v320 = vmax.f32 %v272, 0.0
    %v321 = vmax.f32 %v277, 0.0
    %v322 = vmax.f32 %v280, 0.0
    %v323 = vmax.f32 %v285, 0.0
    %v324 = vmax.f32 %v288, 0.0
    %v325 = vmax.f32 %v293, 0.0
    %v326 = vmax.f32 %v296, 0.0
    %v327 = vmax.f32 %v301, 0.0
    %v328 = vmax.f32 %v304, 0.0
    %v329 = vmax.f32 %v309, 0.0
    %v330 = vmax.f32 %v312, 0.0
    %v331 = vld [vmem:[%s3] sm:$0xf]
    %v332 = vld [vmem:[%s3 + $0x4] sm:$0xf]
    %v333 = vld [vmem:[%s3 + $0x8] sm:$0xf]
    %v334 = vld [vmem:[%s3 + $0xc] sm:$0xf]
    %v335 = vld [vmem:[%s3 + $0x10] sm:$0xf]
    %v336 = vld [vmem:[%s3 + $0x14] sm:$0xf]
    %v337 = vld [vmem:[%s3 + $0x18] sm:$0xf]
    %v338 = vld [vmem:[%s3 + $0x1c] sm:$0xf]
    %v339 = vld [vmem:[%s3 + $0x20] sm:$0xf]
    %v340 = vld [vmem:[%s3 + $0x24] sm:$0xf]
    %v341 = vld [vmem:[%s3 + $0x28] sm:$0xf]
    %v342 = vld [vmem:[%s3 + $0x2c] sm:$0xf]
    %v343 = vld [vmem:[%s3 + $0x30] sm:$0xf]
    %v344 = vld [vmem:[%s3 + $0x34] sm:$0xf]
    %v345 = vld [vmem:[%s3 + $0x38] sm:$0xf]
    %v346 = vld [vmem:[%s3 + $0x3c] sm:$0xf]
    %v347 = vpack.c.bf16 %v316, %v315
    %v348 = vpack.c.bf16 %v318, %v317
    %v349 = vpack.c.bf16 %v320, %v319
    %v350 = vpack.c.bf16 %v322, %v321
    %v351 = vpack.c.bf16 %v324, %v323
    %v352 = vpack.c.bf16 %v326, %v325
    %v353 = vpack.c.bf16 %v328, %v327
    %v354 = vpack.c.bf16 %v330, %v329
    %v355 = vld [vmem:[%s4] sm:$0xff]
    %v356 = vld [vmem:[%s4 + $0x8] sm:$0xff]
    %v357 = vld [vmem:[%s4 + $0x10] sm:$0xff]
    %v358 = vld [vmem:[%s4 + $0x18] sm:$0xff]
    %v359 = vld [vmem:[%s4 + $0x20] sm:$0xff]
    %v360 = vld [vmem:[%s4 + $0x28] sm:$0xff]
    %v361 = vld [vmem:[%s4 + $0x30] sm:$0xff]
    %v362 = vld [vmem:[%s4 + $0x38] sm:$0xff]
    %v363 = vld [vmem:[%s4 + $0x40] sm:$0xff]
    %v364 = vld [vmem:[%s4 + $0x48] sm:$0xff]
    %v365 = vld [vmem:[%s4 + $0x50] sm:$0xff]
    %v366 = vld [vmem:[%s4 + $0x58] sm:$0xff]
    %v367 = vld [vmem:[%s4 + $0x60] sm:$0xff]
    %v368 = vld [vmem:[%s4 + $0x68] sm:$0xff]
    %v369 = vld [vmem:[%s4 + $0x70] sm:$0xff]
    %v370 = vld [vmem:[%s4 + $0x78] sm:$0xff]
    %372 = vset.pattern.permute.xlu0 0
    %373 = vperm.xlu0 %372, %v355
    %v374 = vpop.permute.xlu0 %373
    %377 = vset.pattern.permute.xlu0 0
    %378 = vperm.xlu0 %377, %v356
    %v379 = vpop.permute.xlu0 %378
    %382 = vset.pattern.permute.xlu0 0
    %383 = vperm.xlu0 %382, %v357
    %v384 = vpop.permute.xlu0 %383
    %387 = vset.pattern.permute.xlu0 0
    %388 = vperm.xlu0 %387, %v358
    %v389 = vpop.permute.xlu0 %388
    %392 = vset.pattern.permute.xlu0 0
    %393 = vperm.xlu0 %392, %v359
    %v394 = vpop.permute.xlu0 %393
    %397 = vset.pattern.permute.xlu0 0
    %398 = vperm.xlu0 %397, %v360
    %v399 = vpop.permute.xlu0 %398
    %402 = vset.pattern.permute.xlu0 0
    %403 = vperm.xlu0 %402, %v361
    %v404 = vpop.permute.xlu0 %403
    %407 = vset.pattern.permute.xlu0 0
    %408 = vperm.xlu0 %407, %v362
    %v409 = vpop.permute.xlu0 %408
    %412 = vset.pattern.permute.xlu0 0
    %413 = vperm.xlu0 %412, %v363
    %v414 = vpop.permute.xlu0 %413
    %417 = vset.pattern.permute.xlu0 0
    %418 = vperm.xlu0 %417, %v364
    %v419 = vpop.permute.xlu0 %418
    %422 = vset.pattern.permute.xlu0 0
    %423 = vperm.xlu0 %422, %v365
    %v424 = vpop.permute.xlu0 %423
    %427 = vset.pattern.permute.xlu0 0
    %428 = vperm.xlu0 %427, %v366
    %v429 = vpop.permute.xlu0 %428
    %432 = vset.pattern.permute.xlu0 0
    %433 = vperm.xlu0 %432, %v367
    %v434 = vpop.permute.xlu0 %433
    %437 = vset.pattern.permute.xlu0 0
    %438 = vperm.xlu0 %437, %v368
    %v439 = vpop.permute.xlu0 %438
    %442 = vset.pattern.permute.xlu0 0
    %443 = vperm.xlu0 %442, %v369
    %v444 = vpop.permute.xlu0 %443
    %447 = vset.pattern.permute.xlu0 0
    %448 = vperm.xlu0 %447, %v370
    %v449 = vpop.permute.xlu0 %448
    %v467 = vunpack.c.l.b16 %v331
    %v468 = vunpack.c.l.b16 %v332
    %v469 = vunpack.c.l.b16 %v333
    %v470 = vunpack.c.l.b16 %v334
    %v471 = vunpack.c.l.b16 %v335
    %v472 = vunpack.c.l.b16 %v336
    %v473 = vunpack.c.l.b16 %v337
    %v474 = vunpack.c.l.b16 %v338
    %v475 = vunpack.c.l.b16 %v339
    %v476 = vunpack.c.l.b16 %v340
    %v477 = vunpack.c.l.b16 %v341
    %v478 = vunpack.c.l.b16 %v342
    %v479 = vunpack.c.l.b16 %v343
    %v480 = vunpack.c.l.b16 %v344
    %v481 = vunpack.c.l.b16 %v345
    %v482 = vunpack.c.l.b16 %v346
    %v483 = vpack.c.b16 %v468, %v467
    %v484 = vpack.c.b16 %v470, %v469
    %v485 = vpack.c.b16 %v472, %v471
    %v486 = vpack.c.b16 %v474, %v473
    %v487 = vpack.c.b16 %v476, %v475
    %v488 = vpack.c.b16 %v478, %v477
    %v489 = vpack.c.b16 %v480, %v479
    %v490 = vpack.c.b16 %v482, %v481
    %499 = vmatprep.subr.bf16.mxu0 0
    %500 = vmatpush1.bf16.msra.mxu0 %v347
    %501 = vmatprep.subr.bf16.mxu0 0
    %502 = vmatpush1.bf16.msra.mxu0 %v348
    %503 = vmatprep.subr.bf16.mxu0 0
    %504 = vmatpush1.bf16.msra.mxu0 %v349
    %505 = vmatprep.subr.bf16.mxu0 0
    %506 = vmatpush1.bf16.msra.mxu0 %v350
    %507 = vmatprep.subr.bf16.mxu0 0
    %508 = vmatpush1.bf16.msra.mxu0 %v351
    %509 = vmatprep.subr.bf16.mxu0 0
    %510 = vmatpush1.bf16.msra.mxu0 %v352
    %511 = vmatprep.subr.bf16.mxu0 0
    %512 = vmatpush1.bf16.msra.mxu0 %v353
    %513 = vmatprep.subr.bf16.mxu0 0
    %514 = vmatpush1.bf16.msra.mxu0 %v354
    %515 = vmatprep.subr.bf16.mxu0 0
    %516 = vmatpush1.bf16.msra.mxu0 0
    %517 = vmatprep.subr.bf16.mxu0 0
    %518 = vmatpush1.bf16.msra.mxu0 0
    %519 = vmatprep.subr.bf16.mxu0 0
    %520 = vmatpush1.bf16.msra.mxu0 0
    %521 = vmatprep.subr.bf16.mxu0 0
    %522 = vmatpush1.bf16.msra.mxu0 0
    %523 = vmatprep.subr.bf16.mxu0 0
    %524 = vmatpush1.bf16.msra.mxu0 0
    %525 = vmatprep.subr.bf16.mxu0 0
    %526 = vmatpush1.bf16.msra.mxu0 0
    %527 = vmatprep.subr.bf16.mxu0 0
    %528 = vmatpush1.bf16.msra.mxu0 0
    %529 = vmatprep.subr.bf16.mxu0 0
    %530 = vmatpush1.bf16.msra.mxu0 0
    %531 = vmatprep.mubr.bf16.mxu0 0
    %532 = vmatmul.mubr.bf16.gmra.mrb[0].mxu0 %v483
    %v533 = vpop.f32.mrb[0].mxu0
    %v534 = vadd.f32 %v374, %v533
    %v535 = vpop.f32.mrb[0].mxu0
    %v536 = vpop.f32.mrb[0].mxu0
    %v537 = vadd.f32 %v379, %v536
    %v538 = vpop.f32.mrb[0].mxu0
    %539 = vmatprep.mubr.bf16.mxu0 0
    %540 = vmatmul.mubr.bf16.gmra.mrb[0].mxu0 %v484
    %v541 = vpop.f32.mrb[0].mxu0
    %v542 = vadd.f32 %v384, %v541
    %v543 = vpop.f32.mrb[0].mxu0
    %v544 = vpop.f32.mrb[0].mxu0
    %v545 = vadd.f32 %v389, %v544
    %v546 = vpop.f32.mrb[0].mxu0
    %547 = vmatprep.mubr.bf16.mxu0 0
    %548 = vmatmul.mubr.bf16.gmra.mrb[0].mxu0 %v485
    %v549 = vpop.f32.mrb[0].mxu0
    %v550 = vadd.f32 %v394, %v549
    %v551 = vpop.f32.mrb[0].mxu0
    %v552 = vpop.f32.mrb[0].mxu0
    %v553 = vadd.f32 %v399, %v552
    %v554 = vpop.f32.mrb[0].mxu0
    %555 = vmatprep.mubr.bf16.mxu0 0
    %556 = vmatmul.mubr.bf16.gmra.mrb[0].mxu0 %v486
    %v557 = vpop.f32.mrb[0].mxu0
    %v558 = vadd.f32 %v404, %v557
    %v559 = vpop.f32.mrb[0].mxu0
    %v560 = vpop.f32.mrb[0].mxu0
    %v561 = vadd.f32 %v409, %v560
    %v562 = vpop.f32.mrb[0].mxu0
    %563 = vmatprep.mubr.bf16.mxu0 0
    %564 = vmatmul.mubr.bf16.gmra.mrb[0].mxu0 %v487
    %v565 = vpop.f32.mrb[0].mxu0
    %v566 = vadd.f32 %v414, %v565
    %v567 = vpop.f32.mrb[0].mxu0
    %v568 = vpop.f32.mrb[0].mxu0
    %v569 = vadd.f32 %v419, %v568
    %v570 = vpop.f32.mrb[0].mxu0
    %571 = vmatprep.mubr.bf16.mxu0 0
    %572 = vmatmul.mubr.bf16.gmra.mrb[0].mxu0 %v488
    %v573 = vpop.f32.mrb[0].mxu0
    %v574 = vadd.f32 %v424, %v573
    %v575 = vpop.f32.mrb[0].mxu0
    %v576 = vpop.f32.mrb[0].mxu0
    %v577 = vadd.f32 %v429, %v576
    %v578 = vpop.f32.mrb[0].mxu0
    %579 = vmatprep.mubr.bf16.mxu0 0
    %580 = vmatmul.mubr.bf16.gmra.mrb[0].mxu0 %v489
    %v581 = vpop.f32.mrb[0].mxu0
    %v582 = vadd.f32 %v434, %v581
    %v583 = vpop.f32.mrb[0].mxu0
    %v584 = vpop.f32.mrb[0].mxu0
    %v585 = vadd.f32 %v439, %v584
    %v586 = vpop.f32.mrb[0].mxu0
    %587 = vmatprep.mubr.bf16.mxu0 0
    %588 = vmatmul.mubr.bf16.gmra.mrb[0].mxu0 %v490
    %v589 = vpop.f32.mrb[0].mxu0
    %v590 = vadd.f32 %v444, %v589
    %v591 = vpop.f32.mrb[0].mxu0
    %v592 = vpop.f32.mrb[0].mxu0
    %v593 = vadd.f32 %v449, %v592
    %v594 = vpop.f32.mrb[0].mxu0
    %595 = vdwg.mxu0
    %v596 = vmax.f32 %v534, 0.0
    %v597 = vmax.f32 %v537, 0.0
    %v598 = vmax.f32 %v542, 0.0
    %v599 = vmax.f32 %v545, 0.0
    %v600 = vmax.f32 %v550, 0.0
    %v601 = vmax.f32 %v553, 0.0
    %v602 = vmax.f32 %v558, 0.0
    %v603 = vmax.f32 %v561, 0.0
    %v604 = vmax.f32 %v566, 0.0
    %v605 = vmax.f32 %v569, 0.0
    %v606 = vmax.f32 %v574, 0.0
    %v607 = vmax.f32 %v577, 0.0
    %v608 = vmax.f32 %v582, 0.0
    %v609 = vmax.f32 %v585, 0.0
    %v610 = vmax.f32 %v590, 0.0
    %v611 = vmax.f32 %v593, 0.0
    %v612 = vld [vmem:[%s5] sm:$0xff]
    %v613 = vld [vmem:[%s5 + $0x8] sm:$0xff]
    %v614 = vld [vmem:[%s5 + $0x10] sm:$0xff]
    %v615 = vld [vmem:[%s5 + $0x18] sm:$0xff]
    %v616 = vld [vmem:[%s5 + $0x20] sm:$0xff]
    %v617 = vld [vmem:[%s5 + $0x28] sm:$0xff]
    %v618 = vld [vmem:[%s5 + $0x30] sm:$0xff]
    %v619 = vld [vmem:[%s5 + $0x38] sm:$0xff]
    %v620 = vld [vmem:[%s5 + $0x40] sm:$0xff]
    %v621 = vld [vmem:[%s5 + $0x48] sm:$0xff]
    %v622 = vld [vmem:[%s5 + $0x50] sm:$0xff]
    %v623 = vld [vmem:[%s5 + $0x58] sm:$0xff]
    %v624 = vld [vmem:[%s5 + $0x60] sm:$0xff]
    %v625 = vld [vmem:[%s5 + $0x68] sm:$0xff]
    %v626 = vld [vmem:[%s5 + $0x70] sm:$0xff]
    %v627 = vld [vmem:[%s5 + $0x78] sm:$0xff]
    %629 = vset.pattern.permute.xlu0 0
    %630 = vperm.xlu0 %629, %v612
    %v631 = vpop.permute.xlu0 %630
    %634 = vset.pattern.permute.xlu0 0
    %635 = vperm.xlu0 %634, %v613
    %v636 = vpop.permute.xlu0 %635
    %639 = vset.pattern.permute.xlu0 0
    %640 = vperm.xlu0 %639, %v614
    %v641 = vpop.permute.xlu0 %640
    %644 = vset.pattern.permute.xlu0 0
    %645 = vperm.xlu0 %644, %v615
    %v646 = vpop.permute.xlu0 %645
    %649 = vset.pattern.permute.xlu0 0
    %650 = vperm.xlu0 %649, %v616
    %v651 = vpop.permute.xlu0 %650
    %654 = vset.pattern.permute.xlu0 0
    %655 = vperm.xlu0 %654, %v617
    %v656 = vpop.permute.xlu0 %655
    %659 = vset.pattern.permute.xlu0 0
    %660 = vperm.xlu0 %659, %v618
    %v661 = vpop.permute.xlu0 %660
    %664 = vset.pattern.permute.xlu0 0
    %665 = vperm.xlu0 %664, %v619
    %v666 = vpop.permute.xlu0 %665
    %669 = vset.pattern.permute.xlu0 0
    %670 = vperm.xlu0 %669, %v620
    %v671 = vpop.permute.xlu0 %670
    %674 = vset.pattern.permute.xlu0 0
    %675 = vperm.xlu0 %674, %v621
    %v676 = vpop.permute.xlu0 %675
    %679 = vset.pattern.permute.xlu0 0
    %680 = vperm.xlu0 %679, %v622
    %v681 = vpop.permute.xlu0 %680
    %684 = vset.pattern.permute.xlu0 0
    %685 = vperm.xlu0 %684, %v623
    %v686 = vpop.permute.xlu0 %685
    %689 = vset.pattern.permute.xlu0 0
    %690 = vperm.xlu0 %689, %v624
    %v691 = vpop.permute.xlu0 %690
    %694 = vset.pattern.permute.xlu0 0
    %695 = vperm.xlu0 %694, %v625
    %v696 = vpop.permute.xlu0 %695
    %699 = vset.pattern.permute.xlu0 0
    %700 = vperm.xlu0 %699, %v626
    %v701 = vpop.permute.xlu0 %700
    %704 = vset.pattern.permute.xlu0 0
    %705 = vperm.xlu0 %704, %v627
    %v706 = vpop.permute.xlu0 %705
    %v708 = vmul.f32 %v596, %v631
    %v709 = vmul.f32 %v597, %v636
    %v710 = vmul.f32 %v598, %v641
    %v711 = vmul.f32 %v599, %v646
    %v712 = vmul.f32 %v600, %v651
    %v713 = vmul.f32 %v601, %v656
    %v714 = vmul.f32 %v602, %v661
    %v715 = vmul.f32 %v603, %v666
    %v716 = vmul.f32 %v604, %v671
    %v717 = vmul.f32 %v605, %v676
    %v718 = vmul.f32 %v606, %v681
    %v719 = vmul.f32 %v607, %v686
    %v720 = vmul.f32 %v608, %v691
    %v721 = vmul.f32 %v609, %v696
    %v722 = vmul.f32 %v610, %v701
    %v723 = vmul.f32 %v611, %v706
    %v724 = vadd.f32 %v708, %v709
    %v725 = vadd.f32 %v724, %v710
    %v726 = vadd.f32 %v725, %v711
    %v727 = vadd.f32 %v726, %v712
    %v728 = vadd.f32 %v727, %v713
    %v729 = vadd.f32 %v728, %v714
    %v730 = vadd.f32 %v729, %v715
    %v731 = vadd.f32 %v730, %v716
    %v732 = vadd.f32 %v731, %v717
    %v733 = vadd.f32 %v732, %v718
    %v734 = vadd.f32 %v733, %v719
    %v735 = vadd.f32 %v734, %v720
    %v736 = vadd.f32 %v735, %v721
    %v737 = vadd.f32 %v736, %v722
    %v738 = vadd.f32 %v737, %v723
    %v739 = vrot.slane %v738, 4
    %v740 = vadd.f32 %v738, %v739
    %v741 = vrot.slane %v740, 2
    %v742 = vadd.f32 %v740, %v741
    %v743 = vrot.slane %v742, 1
    %v744 = vadd.f32 %v742, %v743
    %v745 = vld [vmem:[#allocation2] sm:$0x1]
    %747 = vset.pattern.permute.xlu0 0
    %748 = vperm.xlu0 %747, %v745
    %v749 = vpop.permute.xlu0 %748
    %v751 = vlaneseq
    %v752 = vshrl.u32 %v751, 7
    %v753 = vsub.s32 0, %v752
    %v754 = vrot.slane %v749, %v753
    %v755 = vadd.f32 %v744, %v754
    %756 = vst [vmem:[#allocation3] sm:$0x1] %v755
    // Predicated region
    $region30: #{critic_forward.1} parent=1 // pred_check
      _
    $region31: #{critic_forward.1} parent=1 // pred_check_branch
      %758 = sbr.rel (0) target = $region33
    $region32: #{critic_forward.1} parent=1 // pred_region
      %s760 = ssub.s32 16, 16
      %761 = vsyncadd [#allocation4], %s760
      %s763 = sshll.u32 [#allocation3], 4
      %s764 = int_to_ptr.vmem [resolvable:$true] %s763
      %766 = dma.vmem_to_hbm [thread:$0]  %s764, 16, %s7, [#allocation4]
    $region33: #{critic_forward.1} parent=1 // pred_fallthru
      _
    // Predicated region
    $region34: #{critic_forward.1} parent=1 // pred_check
      _
    $region35: #{critic_forward.1} parent=1 // pred_check_branch
      %768 = sbr.rel (0) target = $region37
    $region36: #{critic_forward.1} parent=1 // pred_region
      %769 = dma.done [#allocation4], 16
    $region37: #{critic_forward.1} parent=1 // pred_fallthru
      _
    %770 = vsyncpa [#allocation4], 1

</llo_original>
